<compile_context>
chip_gen: v5e
topology: v5e:2x2
jax: 0.10.0
libtpu: 0.0.40
codegen_flags: <defaults>
</compile_context>

<pallas_src>
import functools

import jax
import jax.numpy as jnp
from jax.experimental import pallas as pl
from jax.experimental.pallas import tpu as pltpu

EPS = 1e-5
LANE = 128


def _ceil_div(a, b):
    return -(-a // b)


def _round_up(a, b):
    return _ceil_div(a, b) * b


def _layernorm_cols(x, gamma, beta):
    # LayerNorm over the feature (sublane) axis 0 of a (features, batch) tile.
    # Two-pass statistics in f32 (numerically robust), biased variance, eps=1e-5.
    mean = jnp.mean(x, axis=0, keepdims=True)
    xc = x - mean
    var = jnp.mean(xc * xc, axis=0, keepdims=True)
    return xc * jax.lax.rsqrt(var + EPS) * gamma + beta


def _act(h, activation):
    if activation == "relu":
        return jnp.maximum(h, 0.0)
    if activation == "tanh":
        return jnp.tanh(h)                       # EUP
    return jax.nn.gelu(h, approximate=False)     # 'gelu' (exact erf, as nn.GELU)


def mlp_base_kernel(layer_n, activation,
                    x_ref, fng_ref, fnb_ref,
                    w1_ref, b1_ref, g1_ref, be1_ref,
                    wh_ref, bh_ref, gh_ref, beh_ref,
                    o_ref):
    # Transposed layout: features on sublanes (axis 0), batch on lanes (axis 1).
    x = x_ref[...].astype(jnp.float32)

    # feature_norm (use_feature_normalization=True)
    x = _layernorm_cols(x, fng_ref[...], fnb_ref[...])

    # fc1: Linear(obs_dim -> hidden) -> act -> LayerNorm(hidden), all as h^T.
    h = jnp.dot(w1_ref[...], x, preferred_element_type=jnp.float32) + b1_ref[...]
    h = _act(h, activation)
    h = _layernorm_cols(h, g1_ref[...], be1_ref[...])

    # fc2: layer_N clones of fc_h (identical initial weights by construction).
    # Shared parameter loads hoisted out of the trace-time-unrolled loop; the
    # (H, 1) columns broadcast across lanes inside the add/mul (single lane
    # broadcast per vreg, nothing materialized per layer).
    wh = wh_ref[...]
    bh = bh_ref[...]
    gh = gh_ref[...]
    beh = beh_ref[...]
    for _ in range(layer_n):
        h = jnp.dot(wh, h, preferred_element_type=jnp.float32) + bh
        h = _act(h, activation)
        h = _layernorm_cols(h, gh, beh)

    o_ref[...] = h.astype(o_ref.dtype)


def mlp_base_forward(x, params, layer_n, *, activation="relu", tile_b=2048):
    B, D = x.shape
    H = params["w1t"].shape[0]
    out_dtype = x.dtype

    # Resident parameter footprint (f32) -- must fit VMEM alongside the tiles.
    w_bytes = (H * D + H * H + 2 * D + 6 * H) * 4
    assert w_bytes <= 16 * 1024 * 1024, (
        "hidden/obs too large for VMEM-resident weights on v7x (64 MiB VMEM); "
        "TODO(synk): add a hidden-dim grid axis (tile wht) for very large H")

    # ---- batch (lane) tiling ------------------------------------------------
    # Pad batch only up to lane / tile granularity.
    B_pad = _round_up(max(B, LANE), LANE)
    n_blocks = B_pad // LANE
    # Keep double-buffered x/out tiles inside a modest VMEM budget.
    tile_budget = 8 * 1024 * 1024
    max_tile_cols = max(LANE, (tile_budget - w_bytes) // (2 * (D + H) * 4))
    tile_blocks = max(1, min(tile_b, max_tile_cols) // LANE)
    if n_blocks >= 2:
        # >= 2 grid steps so the "parallel" axis can shard across v7x's two
        # TensorCores (costs nothing on single-TC v5e/v6e).
        tile_blocks = min(tile_blocks, _ceil_div(n_blocks, 2))
    tile_blocks = min(tile_blocks, n_blocks)
    TB = tile_blocks * LANE
    n_tiles = _ceil_div(n_blocks, tile_blocks)
    B_full = n_tiles * TB   # at most TB - LANE columns of extra padding

    # Transpose to (features, batch): batch -> 128-lane axis (lane-dense MXU and
    # stores), features -> sublanes.  Wrapper transposes are layout plumbing.
    xt = jnp.transpose(x)
    if B_full != B:
        xt = jnp.pad(xt, ((0, 0), (0, B_full - B)))

    args = (xt,
            params["fn_g"], params["fn_b"],
            params["w1t"], params["b1"], params["g1"], params["be1"],
            params["wht"], params["bh"], params["gh"], params["beh"])

    def const_spec(a):
        # Full-array block with a constant index_map: stays VMEM-resident
        # across grid steps (weights / biases / LayerNorm affines).
        return pl.BlockSpec(a.shape, lambda i, _nd=a.ndim: (0,) * _nd)

    in_specs = ([pl.BlockSpec((D, TB), lambda i: (0, i))]
                + [const_spec(a) for a in args[1:]])

    # VMEM limit: actual footprint with headroom, clamped to half the physical
    # VMEM of the generation we compile for (64 MiB v7x, 128 MiB v5e/v6e).
    vmem_need = 2 * (D + H) * TB * 4 + w_bytes
    try:
        phys = getattr(pltpu.get_tpu_info(), "vmem_capacity_bytes",
                       64 * 1024 * 1024)
    except Exception:  # conservative fallback: v7x-sized VMEM
        phys = 64 * 1024 * 1024
    vmem_limit = int(min(max(32 * 1024 * 1024, 2 * vmem_need), phys // 2))

    out_t = pl.pallas_call(
        functools.partial(mlp_base_kernel, layer_n, activation),
        out_shape=jax.ShapeDtypeStruct((H, B_full), out_dtype),
        grid=(n_tiles,),
        in_specs=in_specs,
        out_specs=pl.BlockSpec((H, TB), lambda i: (0, i)),
        compiler_params=pltpu.CompilerParams(
            dimension_semantics=("parallel",),   # batch tiles across TCs (v7x)
            vmem_limit_bytes=vmem_limit,
        ),
    )(*args)

    return jnp.transpose(out_t[:, :B])


def xavier_uniform(key, shape, gain):
    fan_out, fan_in = shape        # PyTorch Linear weight layout is (out, in)
    a = gain * (6.0 / (fan_in + fan_out)) ** 0.5
    return jax.random.uniform(key, shape, jnp.float32, -a, a)


def init_params(key, obs_dim, hidden, gain):
    k1, k2 = jax.random.split(key)
    return {
        # feature_norm LayerNorm(obs_dim): column vectors for the (D, B) layout
        "fn_g": jnp.ones((obs_dim, 1), jnp.float32),
        "fn_b": jnp.zeros((obs_dim, 1), jnp.float32),
        # fc1: Linear(obs_dim, hidden) weight stored PyTorch-style (out, in)
        "w1t": xavier_uniform(k1, (hidden, obs_dim), gain),
        "b1": jnp.zeros((hidden, 1), jnp.float32),
        "g1": jnp.ones((hidden, 1), jnp.float32),
        "be1": jnp.zeros((hidden, 1), jnp.float32),
        # fc_h: Linear(hidden, hidden) shared by all layer_N clones
        "wht": xavier_uniform(k2, (hidden, hidden), gain),
        "bh": jnp.zeros((hidden, 1), jnp.float32),
        "gh": jnp.ones((hidden, 1), jnp.float32),
        "beh": jnp.zeros((hidden, 1), jnp.float32),
    }


def reference_forward(x, p, layer_n, activation="relu"):
    # Pure-JAX f32 reference in the standard (batch, features) layout.
    def ln(v, g, b):
        mean = jnp.mean(v, axis=-1, keepdims=True)
        vc = v - mean
        var = jnp.mean(vc * vc, axis=-1, keepdims=True)
        return vc * jax.lax.rsqrt(var + EPS) * g + b

    def act(v):
        if activation == "relu":
            return jnp.maximum(v, 0.0)
        if activation == "tanh":
            return jnp.tanh(v)
        return jax.nn.gelu(v, approximate=False)

    h = ln(x, p["fn_g"][:, 0], p["fn_b"][:, 0])
    h = act(h @ p["w1t"].T + p["b1"][:, 0])
    h = ln(h, p["g1"][:, 0], p["be1"][:, 0])
    for _ in range(layer_n):
        h = act(h @ p["wht"].T + p["bh"][:, 0])
        h = ln(h, p["gh"][:, 0], p["beh"][:, 0])
    return h


if __name__ == "__main__":
    # args: use_feature_normalization=True, use_orthogonal=False (xavier),
    #       activation='relu' (gain=sqrt(2)), layer_N=2, critic_hidden_dim=32
    batch, obs_dim, hidden, layer_n = 8, 32, 32, 2
    gain = 2.0 ** 0.5

    key = jax.random.PRNGKey(0)
    kx, kp = jax.random.split(key)
    x = jax.random.normal(kx, (batch, obs_dim), jnp.float32)
    params = init_params(kp, obs_dim, hidden, gain)

    out = mlp_base_forward(x, params, layer_n, activation="relu")
    out = jax.block_until_ready(out)

    ref = reference_forward(x, params, layer_n, activation="relu")
    assert out.shape == (batch, hidden)
    # Loose tolerance: the only expected divergence is MXU matmul pass count /
    # association order vs the XLA reference; real layout/indexing bugs are O(1).
    assert jnp.allclose(out, ref, atol=2e-2, rtol=2e-2), "mismatch vs JAX reference"

    print("KERNEL_OK")
</pallas_src>

<mosaic_0001>
module attributes {stable_mosaic.version = 11 : i64} {
  func.func @mlp_base_kernel(%arg0: i32, %arg1: memref<32x128xf32, #tpu.memory_space<vmem>>, %arg2: memref<32x1xf32, #tpu.memory_space<vmem>>, %arg3: memref<32x1xf32, #tpu.memory_space<vmem>>, %arg4: memref<32x32xf32, #tpu.memory_space<vmem>>, %arg5: memref<32x1xf32, #tpu.memory_space<vmem>>, %arg6: memref<32x1xf32, #tpu.memory_space<vmem>>, %arg7: memref<32x1xf32, #tpu.memory_space<vmem>>, %arg8: memref<32x32xf32, #tpu.memory_space<vmem>>, %arg9: memref<32x1xf32, #tpu.memory_space<vmem>>, %arg10: memref<32x1xf32, #tpu.memory_space<vmem>>, %arg11: memref<32x1xf32, #tpu.memory_space<vmem>>, %arg12: memref<32x128xf32, #tpu.memory_space<vmem>>) attributes {dimension_semantics = [#tpu.dimension_semantics<parallel>], iteration_bounds = array<i64: 1>, scalar_prefetch = 0 : i64, scratch_operands = 0 : i64, tpu.core_type = #tpu.core_type<tc>, window_params = [{transform_indices = @transform_0, window_bounds = array<i64: 32, 128>}, {pipeline_mode = #tpu.pipeline_mode<synchronous>, transform_indices = @transform_1, window_bounds = array<i64: 32, 1>}, {pipeline_mode = #tpu.pipeline_mode<synchronous>, transform_indices = @transform_2, window_bounds = array<i64: 32, 1>}, {pipeline_mode = #tpu.pipeline_mode<synchronous>, transform_indices = @transform_3, window_bounds = array<i64: 32, 32>}, {pipeline_mode = #tpu.pipeline_mode<synchronous>, transform_indices = @transform_4, window_bounds = array<i64: 32, 1>}, {pipeline_mode = #tpu.pipeline_mode<synchronous>, transform_indices = @transform_5, window_bounds = array<i64: 32, 1>}, {pipeline_mode = #tpu.pipeline_mode<synchronous>, transform_indices = @transform_6, window_bounds = array<i64: 32, 1>}, {pipeline_mode = #tpu.pipeline_mode<synchronous>, transform_indices = @transform_7, window_bounds = array<i64: 32, 32>}, {pipeline_mode = #tpu.pipeline_mode<synchronous>, transform_indices = @transform_8, window_bounds = array<i64: 32, 1>}, {pipeline_mode = #tpu.pipeline_mode<synchronous>, transform_indices = @transform_9, window_bounds = array<i64: 32, 1>}, {pipeline_mode = #tpu.pipeline_mode<synchronous>, transform_indices = @transform_10, window_bounds = array<i64: 32, 1>}, {transform_indices = @transform_11, window_bounds = array<i64: 32, 128>}]} {
    %c0 = arith.constant 0 : index
    %c0_0 = arith.constant 0 : index
    %0 = vector.load %arg1[%c0, %c0_0] : memref<32x128xf32, #tpu.memory_space<vmem>>, vector<32x128xf32>
    %c0_1 = arith.constant 0 : index
    %c0_2 = arith.constant 0 : index
    %1 = vector.load %arg2[%c0_1, %c0_2] : memref<32x1xf32, #tpu.memory_space<vmem>>, vector<32x1xf32>
    %c0_3 = arith.constant 0 : index
    %c0_4 = arith.constant 0 : index
    %2 = vector.load %arg3[%c0_3, %c0_4] : memref<32x1xf32, #tpu.memory_space<vmem>>, vector<32x1xf32>
    %cst = arith.constant dense<0.000000e+00> : vector<128xf32>
    %3 = vector.multi_reduction <add>, %0, %cst [0] : vector<32x128xf32> to vector<128xf32>
    %4 = vector.shape_cast %3 : vector<128xf32> to vector<1x128xf32>
    %cst_5 = arith.constant 3.200000e+01 : f32
    %5 = vector.broadcast %cst_5 : f32 to vector<1x128xf32>
    %6 = arith.divf %4, %5 : vector<1x128xf32>
    %7 = vector.broadcast %6 : vector<1x128xf32> to vector<32x128xf32>
    %8 = arith.subf %0, %7 : vector<32x128xf32>
    %9 = arith.mulf %8, %8 : vector<32x128xf32>
    %cst_6 = arith.constant dense<0.000000e+00> : vector<128xf32>
    %10 = vector.multi_reduction <add>, %9, %cst_6 [0] : vector<32x128xf32> to vector<128xf32>
    %11 = vector.shape_cast %10 : vector<128xf32> to vector<1x128xf32>
    %cst_7 = arith.constant 3.200000e+01 : f32
    %12 = vector.broadcast %cst_7 : f32 to vector<1x128xf32>
    %13 = arith.divf %11, %12 : vector<1x128xf32>
    %cst_8 = arith.constant 9.99999974E-6 : f32
    %14 = vector.broadcast %cst_8 : f32 to vector<1x128xf32>
    %15 = arith.addf %13, %14 : vector<1x128xf32>
    %16 = math.rsqrt %15 : vector<1x128xf32>
    %17 = vector.broadcast %16 : vector<1x128xf32> to vector<32x128xf32>
    %18 = arith.mulf %8, %17 : vector<32x128xf32>
    %19 = vector.broadcast %1 : vector<32x1xf32> to vector<32x128xf32>
    %20 = arith.mulf %18, %19 : vector<32x128xf32>
    %21 = vector.broadcast %2 : vector<32x1xf32> to vector<32x128xf32>
    %22 = arith.addf %20, %21 : vector<32x128xf32>
    %c0_9 = arith.constant 0 : index
    %c0_10 = arith.constant 0 : index
    %23 = vector.load %arg4[%c0_9, %c0_10] : memref<32x32xf32, #tpu.memory_space<vmem>>, vector<32x32xf32>
    %cst_11 = arith.constant dense<0.000000e+00> : vector<32x128xf32>
    %24 = tpu.matmul %23, %22, %cst_11 {dimension_numbers = #tpu.dot_dimension_numbers<[1], [0], [0], [1], [0, 0, 1, 1], [], []>} : vector<32x32xf32>, vector<32x128xf32>, vector<32x128xf32> -> vector<32x128xf32>
    %c0_12 = arith.constant 0 : index
    %c0_13 = arith.constant 0 : index
    %25 = vector.load %arg5[%c0_12, %c0_13] : memref<32x1xf32, #tpu.memory_space<vmem>>, vector<32x1xf32>
    %26 = vector.broadcast %25 : vector<32x1xf32> to vector<32x128xf32>
    %27 = arith.addf %24, %26 : vector<32x128xf32>
    %cst_14 = arith.constant 0.000000e+00 : f32
    %28 = vector.broadcast %cst_14 : f32 to vector<32x128xf32>
    %29 = arith.maximumf %27, %28 : vector<32x128xf32>
    %c0_15 = arith.constant 0 : index
    %c0_16 = arith.constant 0 : index
    %30 = vector.load %arg6[%c0_15, %c0_16] : memref<32x1xf32, #tpu.memory_space<vmem>>, vector<32x1xf32>
    %c0_17 = arith.constant 0 : index
    %c0_18 = arith.constant 0 : index
    %31 = vector.load %arg7[%c0_17, %c0_18] : memref<32x1xf32, #tpu.memory_space<vmem>>, vector<32x1xf32>
    %cst_19 = arith.constant dense<0.000000e+00> : vector<128xf32>
    %32 = vector.multi_reduction <add>, %29, %cst_19 [0] : vector<32x128xf32> to vector<128xf32>
    %33 = vector.shape_cast %32 : vector<128xf32> to vector<1x128xf32>
    %cst_20 = arith.constant 3.200000e+01 : f32
    %34 = vector.broadcast %cst_20 : f32 to vector<1x128xf32>
    %35 = arith.divf %33, %34 : vector<1x128xf32>
    %36 = vector.broadcast %35 : vector<1x128xf32> to vector<32x128xf32>
    %37 = arith.subf %29, %36 : vector<32x128xf32>
    %38 = arith.mulf %37, %37 : vector<32x128xf32>
    %cst_21 = arith.constant dense<0.000000e+00> : vector<128xf32>
    %39 = vector.multi_reduction <add>, %38, %cst_21 [0] : vector<32x128xf32> to vector<128xf32>
    %40 = vector.shape_cast %39 : vector<128xf32> to vector<1x128xf32>
    %cst_22 = arith.constant 3.200000e+01 : f32
    %41 = vector.broadcast %cst_22 : f32 to vector<1x128xf32>
    %42 = arith.divf %40, %41 : vector<1x128xf32>
    %cst_23 = arith.constant 9.99999974E-6 : f32
    %43 = vector.broadcast %cst_23 : f32 to vector<1x128xf32>
    %44 = arith.addf %42, %43 : vector<1x128xf32>
    %45 = math.rsqrt %44 : vector<1x128xf32>
    %46 = vector.broadcast %45 : vector<1x128xf32> to vector<32x128xf32>
    %47 = arith.mulf %37, %46 : vector<32x128xf32>
    %48 = vector.broadcast %30 : vector<32x1xf32> to vector<32x128xf32>
    %49 = arith.mulf %47, %48 : vector<32x128xf32>
    %50 = vector.broadcast %31 : vector<32x1xf32> to vector<32x128xf32>
    %51 = arith.addf %49, %50 : vector<32x128xf32>
    %c0_24 = arith.constant 0 : index
    %c0_25 = arith.constant 0 : index
    %52 = vector.load %arg8[%c0_24, %c0_25] : memref<32x32xf32, #tpu.memory_space<vmem>>, vector<32x32xf32>
    %c0_26 = arith.constant 0 : index
    %c0_27 = arith.constant 0 : index
    %53 = vector.load %arg9[%c0_26, %c0_27] : memref<32x1xf32, #tpu.memory_space<vmem>>, vector<32x1xf32>
    %c0_28 = arith.constant 0 : index
    %c0_29 = arith.constant 0 : index
    %54 = vector.load %arg10[%c0_28, %c0_29] : memref<32x1xf32, #tpu.memory_space<vmem>>, vector<32x1xf32>
    %c0_30 = arith.constant 0 : index
    %c0_31 = arith.constant 0 : index
    %55 = vector.load %arg11[%c0_30, %c0_31] : memref<32x1xf32, #tpu.memory_space<vmem>>, vector<32x1xf32>
    %cst_32 = arith.constant dense<0.000000e+00> : vector<32x128xf32>
    %56 = tpu.matmul %52, %51, %cst_32 {dimension_numbers = #tpu.dot_dimension_numbers<[1], [0], [0], [1], [0, 0, 1, 1], [], []>} : vector<32x32xf32>, vector<32x128xf32>, vector<32x128xf32> -> vector<32x128xf32>
    %57 = vector.broadcast %53 : vector<32x1xf32> to vector<32x128xf32>
    %58 = arith.addf %56, %57 : vector<32x128xf32>
    %cst_33 = arith.constant 0.000000e+00 : f32
    %59 = vector.broadcast %cst_33 : f32 to vector<32x128xf32>
    %60 = arith.maximumf %58, %59 : vector<32x128xf32>
    %cst_34 = arith.constant dense<0.000000e+00> : vector<128xf32>
    %61 = vector.multi_reduction <add>, %60, %cst_34 [0] : vector<32x128xf32> to vector<128xf32>
    %62 = vector.shape_cast %61 : vector<128xf32> to vector<1x128xf32>
    %cst_35 = arith.constant 3.200000e+01 : f32
    %63 = vector.broadcast %cst_35 : f32 to vector<1x128xf32>
    %64 = arith.divf %62, %63 : vector<1x128xf32>
    %65 = vector.broadcast %64 : vector<1x128xf32> to vector<32x128xf32>
    %66 = arith.subf %60, %65 : vector<32x128xf32>
    %67 = arith.mulf %66, %66 : vector<32x128xf32>
    %cst_36 = arith.constant dense<0.000000e+00> : vector<128xf32>
    %68 = vector.multi_reduction <add>, %67, %cst_36 [0] : vector<32x128xf32> to vector<128xf32>
    %69 = vector.shape_cast %68 : vector<128xf32> to vector<1x128xf32>
    %cst_37 = arith.constant 3.200000e+01 : f32
    %70 = vector.broadcast %cst_37 : f32 to vector<1x128xf32>
    %71 = arith.divf %69, %70 : vector<1x128xf32>
    %cst_38 = arith.constant 9.99999974E-6 : f32
    %72 = vector.broadcast %cst_38 : f32 to vector<1x128xf32>
    %73 = arith.addf %71, %72 : vector<1x128xf32>
    %74 = math.rsqrt %73 : vector<1x128xf32>
    %75 = vector.broadcast %74 : vector<1x128xf32> to vector<32x128xf32>
    %76 = arith.mulf %66, %75 : vector<32x128xf32>
    %77 = vector.broadcast %54 : vector<32x1xf32> to vector<32x128xf32>
    %78 = arith.mulf %76, %77 : vector<32x128xf32>
    %79 = vector.broadcast %55 : vector<32x1xf32> to vector<32x128xf32>
    %80 = arith.addf %78, %79 : vector<32x128xf32>
    %cst_39 = arith.constant dense<0.000000e+00> : vector<32x128xf32>
    %81 = tpu.matmul %52, %80, %cst_39 {dimension_numbers = #tpu.dot_dimension_numbers<[1], [0], [0], [1], [0, 0, 1, 1], [], []>} : vector<32x32xf32>, vector<32x128xf32>, vector<32x128xf32> -> vector<32x128xf32>
    %82 = vector.broadcast %53 : vector<32x1xf32> to vector<32x128xf32>
    %83 = arith.addf %81, %82 : vector<32x128xf32>
    %cst_40 = arith.constant 0.000000e+00 : f32
    %84 = vector.broadcast %cst_40 : f32 to vector<32x128xf32>
    %85 = arith.maximumf %83, %84 : vector<32x128xf32>
    %cst_41 = arith.constant dense<0.000000e+00> : vector<128xf32>
    %86 = vector.multi_reduction <add>, %85, %cst_41 [0] : vector<32x128xf32> to vector<128xf32>
    %87 = vector.shape_cast %86 : vector<128xf32> to vector<1x128xf32>
    %cst_42 = arith.constant 3.200000e+01 : f32
    %88 = vector.broadcast %cst_42 : f32 to vector<1x128xf32>
    %89 = arith.divf %87, %88 : vector<1x128xf32>
    %90 = vector.broadcast %89 : vector<1x128xf32> to vector<32x128xf32>
    %91 = arith.subf %85, %90 : vector<32x128xf32>
    %92 = arith.mulf %91, %91 : vector<32x128xf32>
    %cst_43 = arith.constant dense<0.000000e+00> : vector<128xf32>
    %93 = vector.multi_reduction <add>, %92, %cst_43 [0] : vector<32x128xf32> to vector<128xf32>
    %94 = vector.shape_cast %93 : vector<128xf32> to vector<1x128xf32>
    %cst_44 = arith.constant 3.200000e+01 : f32
    %95 = vector.broadcast %cst_44 : f32 to vector<1x128xf32>
    %96 = arith.divf %94, %95 : vector<1x128xf32>
    %cst_45 = arith.constant 9.99999974E-6 : f32
    %97 = vector.broadcast %cst_45 : f32 to vector<1x128xf32>
    %98 = arith.addf %96, %97 : vector<1x128xf32>
    %99 = math.rsqrt %98 : vector<1x128xf32>
    %100 = vector.broadcast %99 : vector<1x128xf32> to vector<32x128xf32>
    %101 = arith.mulf %91, %100 : vector<32x128xf32>
    %102 = vector.broadcast %54 : vector<32x1xf32> to vector<32x128xf32>
    %103 = arith.mulf %101, %102 : vector<32x128xf32>
    %104 = vector.broadcast %55 : vector<32x1xf32> to vector<32x128xf32>
    %105 = arith.addf %103, %104 : vector<32x128xf32>
    %c0_46 = arith.constant 0 : index
    %c0_47 = arith.constant 0 : index
    %106 = vector.load %arg12[%c0_46, %c0_47] : memref<32x128xf32, #tpu.memory_space<vmem>>, vector<32x128xf32>
    tpu.vector_store %arg12[%c0_46, %c0_47], %105 {strides = array<i32>} : memref<32x128xf32, #tpu.memory_space<vmem>>, vector<32x128xf32>,
    return
  }
  func.func @transform_0(%arg0: i32) -> (i32, i32) {
    %c0_i32 = arith.constant 0 : i32
    %c0_i32_0 = arith.constant 0 : i32
    return %c0_i32, %arg0 : i32, i32
  }
  func.func @transform_1(%arg0: i32) -> (i32, i32) {
    %c0_i32 = arith.constant 0 : i32
    %c0_i32_0 = arith.constant 0 : i32
    %c0_i32_1 = arith.constant 0 : i32
    return %c0_i32, %c0_i32_0 : i32, i32
  }
  func.func @transform_2(%arg0: i32) -> (i32, i32) {
    %c0_i32 = arith.constant 0 : i32
    %c0_i32_0 = arith.constant 0 : i32
    %c0_i32_1 = arith.constant 0 : i32
    return %c0_i32, %c0_i32_0 : i32, i32
  }
  func.func @transform_3(%arg0: i32) -> (i32, i32) {
    %c0_i32 = arith.constant 0 : i32
    %c0_i32_0 = arith.constant 0 : i32
    %c0_i32_1 = arith.constant 0 : i32
    return %c0_i32, %c0_i32_0 : i32, i32
  }
  func.func @transform_4(%arg0: i32) -> (i32, i32) {
    %c0_i32 = arith.constant 0 : i32
    %c0_i32_0 = arith.constant 0 : i32
    %c0_i32_1 = arith.constant 0 : i32
    return %c0_i32, %c0_i32_0 : i32, i32
  }
  func.func @transform_5(%arg0: i32) -> (i32, i32) {
    %c0_i32 = arith.constant 0 : i32
    %c0_i32_0 = arith.constant 0 : i32
    %c0_i32_1 = arith.constant 0 : i32
    return %c0_i32, %c0_i32_0 : i32, i32
  }
  func.func @transform_6(%arg0: i32) -> (i32, i32) {
    %c0_i32 = arith.constant 0 : i32
    %c0_i32_0 = arith.constant 0 : i32
    %c0_i32_1 = arith.constant 0 : i32
    return %c0_i32, %c0_i32_0 : i32, i32
  }
  func.func @transform_7(%arg0: i32) -> (i32, i32) {
    %c0_i32 = arith.constant 0 : i32
    %c0_i32_0 = arith.constant 0 : i32
    %c0_i32_1 = arith.constant 0 : i32
    return %c0_i32, %c0_i32_0 : i32, i32
  }
  func.func @transform_8(%arg0: i32) -> (i32, i32) {
    %c0_i32 = arith.constant 0 : i32
    %c0_i32_0 = arith.constant 0 : i32
    %c0_i32_1 = arith.constant 0 : i32
    return %c0_i32, %c0_i32_0 : i32, i32
  }
  func.func @transform_9(%arg0: i32) -> (i32, i32) {
    %c0_i32 = arith.constant 0 : i32
    %c0_i32_0 = arith.constant 0 : i32
    %c0_i32_1 = arith.constant 0 : i32
    return %c0_i32, %c0_i32_0 : i32, i32
  }
  func.func @transform_10(%arg0: i32) -> (i32, i32) {
    %c0_i32 = arith.constant 0 : i32
    %c0_i32_0 = arith.constant 0 : i32
    %c0_i32_1 = arith.constant 0 : i32
    return %c0_i32, %c0_i32_0 : i32, i32
  }
  func.func @transform_11(%arg0: i32) -> (i32, i32) {
    %c0_i32 = arith.constant 0 : i32
    %c0_i32_0 = arith.constant 0 : i32
    return %c0_i32, %arg0 : i32, i32
  }
}

</mosaic_0001>

<llo_original>
// kernel: tpu_custom_call.1
$region0: #{tpu_custom_call.1}
  #allocation0 [shape = 'u32[]', space=smem, size = 0x4, offset = 0x4, fixed_abs, tag = 'smem constant byte address 0x4 - core index']
  #allocation1 [shape = 'u32[72,128]{1,0:T(1,128)}', space=vmem, size = 0x9000, scoped, tag = 'internal scratch']
  %s0 = inlined_call_operand.vmem [shape: f32[32,128], index: 0, kind: input, shape index: {}]
  %s1 = inlined_call_operand.vmem [shape: f32[32,1], index: 1, kind: input, shape index: {}]
  %s2 = inlined_call_operand.vmem [shape: f32[32,1], index: 2, kind: input, shape index: {}]
  %s3 = inlined_call_operand.vmem [shape: f32[32,32], index: 3, kind: input, shape index: {}]
  %s4 = inlined_call_operand.vmem [shape: f32[32,1], index: 4, kind: input, shape index: {}]
  %s5 = inlined_call_operand.vmem [shape: f32[32,1], index: 5, kind: input, shape index: {}]
  %s6 = inlined_call_operand.vmem [shape: f32[32,1], index: 6, kind: input, shape index: {}]
  %s7 = inlined_call_operand.vmem [shape: f32[32,32], index: 7, kind: input, shape index: {}]
  %s8 = inlined_call_operand.vmem [shape: f32[32,1], index: 8, kind: input, shape index: {}]
  %s9 = inlined_call_operand.vmem [shape: f32[32,1], index: 9, kind: input, shape index: {}]
  %s10 = inlined_call_operand.vmem [shape: f32[32,1], index: 10, kind: input, shape index: {}]
  %s11 = inlined_call_operand.hbm [shape: f32[32,128], index: 11, kind: output, shape index: {}]
  %s12 = sld [smem:[#allocation0]]
  $region54: #{tpu_custom_call.1} parent=0
    _
  %s14 = ssub.s32 1, %s12
  %s15 = scalar_select 0, %s14, %s12
  $region1: #{tpu_custom_call.1} parent=0
    #allocation2 [shape = 'u8[16384]{0}', space=vmem, size = 0x4000, scoped, tag = 'output window, operand 0, single buffered']
    #allocation3 [shape = 's32[1]{0}', space=sflag, size = 0x4, scoped, tag = 'scoped memory for tpu_custom_call.1']
    %16 = vsyncpa [#allocation3], 0
    // Predicated region
    $region2: #{tpu_custom_call.1} parent=1 // pred_check
      _
    $region3: #{tpu_custom_call.1} parent=1 // pred_check_branch
      %18 = sbr.rel (0) target = $region5
    $region4: #{tpu_custom_call.1} parent=1 // pred_region
      _
    $region5: #{tpu_custom_call.1} parent=1 // pred_fallthru
      _
    // Predicated region
    $region6: #{tpu_custom_call.1} parent=1 // pred_check
      _
    $region7: #{tpu_custom_call.1} parent=1 // pred_check_branch
      %20 = sbr.rel (0) target = $region9
    $region8: #{tpu_custom_call.1} parent=1 // pred_region
      _
    $region9: #{tpu_custom_call.1} parent=1 // pred_fallthru
      _
    // Predicated region
    $region10: #{tpu_custom_call.1} parent=1 // pred_check
      _
    $region11: #{tpu_custom_call.1} parent=1 // pred_check_branch
      %22 = sbr.rel (0) target = $region13
    $region12: #{tpu_custom_call.1} parent=1 // pred_region
      _
    $region13: #{tpu_custom_call.1} parent=1 // pred_fallthru
      _
    // Predicated region
    $region14: #{tpu_custom_call.1} parent=1 // pred_check
      _
    $region15: #{tpu_custom_call.1} parent=1 // pred_check_branch
      %24 = sbr.rel (0) target = $region17
    $region16: #{tpu_custom_call.1} parent=1 // pred_region
      _
    $region17: #{tpu_custom_call.1} parent=1 // pred_fallthru
      _
    // Predicated region
    $region18: #{tpu_custom_call.1} parent=1 // pred_check
      _
    $region19: #{tpu_custom_call.1} parent=1 // pred_check_branch
      %26 = sbr.rel (0) target = $region21
    $region20: #{tpu_custom_call.1} parent=1 // pred_region
      _
    $region21: #{tpu_custom_call.1} parent=1 // pred_fallthru
      _
    // Predicated region
    $region22: #{tpu_custom_call.1} parent=1 // pred_check
      _
    $region23: #{tpu_custom_call.1} parent=1 // pred_check_branch
      %28 = sbr.rel (0) target = $region25
    $region24: #{tpu_custom_call.1} parent=1 // pred_region
      _
    $region25: #{tpu_custom_call.1} parent=1 // pred_fallthru
      _
    // Predicated region
    $region26: #{tpu_custom_call.1} parent=1 // pred_check
      _
    $region27: #{tpu_custom_call.1} parent=1 // pred_check_branch
      %30 = sbr.rel (0) target = $region29
    $region28: #{tpu_custom_call.1} parent=1 // pred_region
      _
    $region29: #{tpu_custom_call.1} parent=1 // pred_fallthru
      _
    // Predicated region
    $region30: #{tpu_custom_call.1} parent=1 // pred_check
      _
    $region31: #{tpu_custom_call.1} parent=1 // pred_check_branch
      %32 = sbr.rel (0) target = $region33
    $region32: #{tpu_custom_call.1} parent=1 // pred_region
      _
    $region33: #{tpu_custom_call.1} parent=1 // pred_fallthru
      _
    // Predicated region
    $region34: #{tpu_custom_call.1} parent=1 // pred_check
      _
    $region35: #{tpu_custom_call.1} parent=1 // pred_check_branch
      %34 = sbr.rel (0) target = $region37
    $region36: #{tpu_custom_call.1} parent=1 // pred_region
      _
    $region37: #{tpu_custom_call.1} parent=1 // pred_fallthru
      _
    // Predicated region
    $region38: #{tpu_custom_call.1} parent=1 // pred_check
      _
    $region39: #{tpu_custom_call.1} parent=1 // pred_check_branch
      %36 = sbr.rel (0) target = $region41
    $region40: #{tpu_custom_call.1} parent=1 // pred_region
      _
    $region41: #{tpu_custom_call.1} parent=1 // pred_fallthru
      _
    // Predicated region
    $region42: #{tpu_custom_call.1} parent=1 // pred_check
      _
    $region43: #{tpu_custom_call.1} parent=1 // pred_check_branch
      %38 = sbr.rel (0) target = $region45
    $region44: #{tpu_custom_call.1} parent=1 // pred_region
      _
    $region45: #{tpu_custom_call.1} parent=1 // pred_fallthru
      _
    %v39 = vld [vmem:[%s0] sm:$0xff]
    %v40 = vld [vmem:[%s0 + $0x8] sm:$0xff]
    %v41 = vld [vmem:[%s0 + $0x10] sm:$0xff]
    %v42 = vld [vmem:[%s0 + $0x18] sm:$0xff]
    %v43 = vld [vmem:[%s1] sm:$0xff]
    %v44 = vld [vmem:[%s1 + $0x8] sm:$0xff]
    %v45 = vld [vmem:[%s1 + $0x10] sm:$0xff]
    %v46 = vld [vmem:[%s1 + $0x18] sm:$0xff]
    %v47 = vld [vmem:[%s2] sm:$0xff]
    %v48 = vld [vmem:[%s2 + $0x8] sm:$0xff]
    %v49 = vld [vmem:[%s2 + $0x10] sm:$0xff]
    %v50 = vld [vmem:[%s2 + $0x18] sm:$0xff]
    %v51 = vadd.f32 %v39, %v40
    %v52 = vadd.f32 %v51, %v41
    %v53 = vadd.f32 %v52, %v42
    %v54 = vrot.slane %v53, 4
    %v55 = vadd.f32 %v53, %v54
    %v56 = vrot.slane %v55, 2
    %v57 = vadd.f32 %v55, %v56
    %v58 = vrot.slane %v57, 1
    %v59 = vadd.f32 %v57, %v58
    %v60 = vrcp.pop 32.0
    %v61 = vmul.f32 32.0, %v60
    %v62 = vsub.f32 1.0, %v61
    %v63 = vmul.f32 %v60, %v62
    %v64 = vadd.f32 %v60, %v63
    %vm65 = vweird.f32 %v60
    %v66 = vsel %vm65, %v60, %v64
    %v67 = vmul.f32 %v59, %v66
    %v68 = vsub.f32 %v39, %v67
    %v69 = vsub.f32 %v40, %v67
    %v70 = vsub.f32 %v41, %v67
    %v71 = vsub.f32 %v42, %v67
    %v72 = vmul.f32 %v68, %v68
    %v73 = vmul.f32 %v69, %v69
    %v74 = vmul.f32 %v70, %v70
    %v75 = vmul.f32 %v71, %v71
    %v76 = vadd.f32 %v72, %v73
    %v77 = vadd.f32 %v76, %v74
    %v78 = vadd.f32 %v77, %v75
    %v79 = vrot.slane %v78, 4
    %v80 = vadd.f32 %v78, %v79
    %v81 = vrot.slane %v80, 2
    %v82 = vadd.f32 %v80, %v81
    %v83 = vrot.slane %v82, 1
    %v84 = vadd.f32 %v82, %v83
    %v85 = vmul.f32 %v84, %v66
    %v86 = vadd.f32 %v85, 1e-05
    %v87 = vrsqrt.pop %v86
    %v88 = vmul.f32 %v87, %v86
    %v89 = vmul.f32 %v88, %v87
    %v90 = vmul.f32 0.5, %v89
    %v91 = vsub.f32 1.5, %v90
    %v92 = vmul.f32 %v87, %v91
    %vm93 = vweird.f32 %v86
    %vm94 = vweird.f32 %v87
    %vm95 = vmor %vm93, %vm94
    %v96 = vsel %vm95, %v87, %v92
    %v97 = vmul.f32 %v68, %v96
    %v98 = vmul.f32 %v69, %v96
    %v99 = vmul.f32 %v70, %v96
    %v100 = vmul.f32 %v71, %v96
    %102 = vset.pattern.permute.xlu0 0
    %103 = vperm.xlu0 %102, %v43
    %v104 = vpop.permute.xlu0 %103
    %107 = vset.pattern.permute.xlu0 0
    %108 = vperm.xlu0 %107, %v44
    %v109 = vpop.permute.xlu0 %108
    %112 = vset.pattern.permute.xlu0 0
    %113 = vperm.xlu0 %112, %v45
    %v114 = vpop.permute.xlu0 %113
    %117 = vset.pattern.permute.xlu0 0
    %118 = vperm.xlu0 %117, %v46
    %v119 = vpop.permute.xlu0 %118
    %v121 = vmul.f32 %v97, %v104
    %v122 = vmul.f32 %v98, %v109
    %v123 = vmul.f32 %v99, %v114
    %v124 = vmul.f32 %v100, %v119
    %126 = vset.pattern.permute.xlu0 0
    %127 = vperm.xlu0 %126, %v47
    %v128 = vpop.permute.xlu0 %127
    %131 = vset.pattern.permute.xlu0 0
    %132 = vperm.xlu0 %131, %v48
    %v133 = vpop.permute.xlu0 %132
    %136 = vset.pattern.permute.xlu0 0
    %137 = vperm.xlu0 %136, %v49
    %v138 = vpop.permute.xlu0 %137
    %141 = vset.pattern.permute.xlu0 0
    %142 = vperm.xlu0 %141, %v50
    %v143 = vpop.permute.xlu0 %142
    %v145 = vadd.f32 %v121, %v128
    %v146 = vadd.f32 %v122, %v133
    %v147 = vadd.f32 %v123, %v138
    %v148 = vadd.f32 %v124, %v143
    %v149 = vld [vmem:[%s3] sm:$0xff]
    %v150 = vld [vmem:[%s3 + $0x8] sm:$0xff]
    %v151 = vld [vmem:[%s3 + $0x10] sm:$0xff]
    %v152 = vld [vmem:[%s3 + $0x18] sm:$0xff]
    %v153 = vld [vmem:[%s4] sm:$0xff]
    %v154 = vld [vmem:[%s4 + $0x8] sm:$0xff]
    %v155 = vld [vmem:[%s4 + $0x10] sm:$0xff]
    %v156 = vld [vmem:[%s4 + $0x18] sm:$0xff]
    %158 = vset.pattern.permute.xlu0 0
    %159 = vperm.xlu0 %158, %v153
    %v160 = vpop.permute.xlu0 %159
    %163 = vset.pattern.permute.xlu0 0
    %164 = vperm.xlu0 %163, %v154
    %v165 = vpop.permute.xlu0 %164
    %168 = vset.pattern.permute.xlu0 0
    %169 = vperm.xlu0 %168, %v155
    %v170 = vpop.permute.xlu0 %169
    %173 = vset.pattern.permute.xlu0 0
    %174 = vperm.xlu0 %173, %v156
    %v175 = vpop.permute.xlu0 %174
    %vm177 = vcmask 261120
    %v179 = vsel %vm177, %v149, 0
    %v182 = vsel %vm177, %v150, 0
    %v185 = vsel %vm177, %v151, 0
    %v188 = vsel %vm177, %v152, 0
    %190 = vmatpush.msra.mxu0 0.0
    %191 = vmatpush.msra.mxu0 0.0
    %192 = vmatpush.msra.mxu0 0.0
    %193 = vmatpush.msra.mxu0 0.0
    %194 = vmatpush.msra.mxu0 0.0
    %195 = vmatpush.msra.mxu0 0.0
    %196 = vmatpush.msra.mxu0 0.0
    %197 = vmatpush.msra.mxu0 0.0
    %198 = vmatpush.msra.mxu0 0.0
    %199 = vmatpush.msra.mxu0 0.0
    %200 = vmatpush.msra.mxu0 0.0
    %201 = vmatpush.msra.mxu0 0.0
    %202 = vmatpush.msra.mxu0 %v148
    %203 = vmatpush.msra.mxu0 %v147
    %204 = vmatpush.msra.mxu0 %v146
    %205 = vmatpush.msra.mxu0 %v145
    %206 = vmatmul.f32.gmra.mxu0 %v179
    %v207 = vpop.f32.mrf.mxu0
    %v208 = vadd.f32 %v160, %v207
    %209 = vmatmul.f32.gmra.mxu0 %v182
    %v210 = vpop.f32.mrf.mxu0
    %v211 = vadd.f32 %v165, %v210
    %212 = vmatmul.f32.gmra.mxu0 %v185
    %v213 = vpop.f32.mrf.mxu0
    %v214 = vadd.f32 %v170, %v213
    %215 = vmatmul.f32.gmra.mxu0 %v188
    %v216 = vpop.f32.mrf.mxu0
    %v217 = vadd.f32 %v175, %v216
    %218 = vdwg.mxu0
    %v219 = vmax.f32 %v208, 0.0
    %v220 = vmax.f32 %v211, 0.0
    %v221 = vmax.f32 %v214, 0.0
    %v222 = vmax.f32 %v217, 0.0
    %v223 = vld [vmem:[%s5] sm:$0xff]
    %v224 = vld [vmem:[%s5 + $0x8] sm:$0xff]
    %v225 = vld [vmem:[%s5 + $0x10] sm:$0xff]
    %v226 = vld [vmem:[%s5 + $0x18] sm:$0xff]
    %v227 = vld [vmem:[%s6] sm:$0xff]
    %v228 = vld [vmem:[%s6 + $0x8] sm:$0xff]
    %v229 = vld [vmem:[%s6 + $0x10] sm:$0xff]
    %v230 = vld [vmem:[%s6 + $0x18] sm:$0xff]
    %v231 = vadd.f32 %v219, %v220
    %v232 = vadd.f32 %v231, %v221
    %v233 = vadd.f32 %v232, %v222
    %v234 = vrot.slane %v233, 4
    %v235 = vadd.f32 %v233, %v234
    %v236 = vrot.slane %v235, 2
    %v237 = vadd.f32 %v235, %v236
    %v238 = vrot.slane %v237, 1
    %v239 = vadd.f32 %v237, %v238
    %v240 = vmul.f32 %v239, %v66
    %v241 = vsub.f32 %v219, %v240
    %v242 = vsub.f32 %v220, %v240
    %v243 = vsub.f32 %v221, %v240
    %v244 = vsub.f32 %v222, %v240
    %v245 = vmul.f32 %v241, %v241
    %v246 = vmul.f32 %v242, %v242
    %v247 = vmul.f32 %v243, %v243
    %v248 = vmul.f32 %v244, %v244
    %v249 = vadd.f32 %v245, %v246
    %v250 = vadd.f32 %v249, %v247
    %v251 = vadd.f32 %v250, %v248
    %v252 = vrot.slane %v251, 4
    %v253 = vadd.f32 %v251, %v252
    %v254 = vrot.slane %v253, 2
    %v255 = vadd.f32 %v253, %v254
    %v256 = vrot.slane %v255, 1
    %v257 = vadd.f32 %v255, %v256
    %v258 = vmul.f32 %v257, %v66
    %v259 = vadd.f32 %v258, 1e-05
    %v260 = vrsqrt.pop %v259
    %v261 = vmul.f32 %v260, %v259
    %v262 = vmul.f32 %v261, %v260
    %v263 = vmul.f32 0.5, %v262
    %v264 = vsub.f32 1.5, %v263
    %v265 = vmul.f32 %v260, %v264
    %vm266 = vweird.f32 %v259
    %vm267 = vweird.f32 %v260
    %vm268 = vmor %vm266, %vm267
    %v269 = vsel %vm268, %v260, %v265
    %v270 = vmul.f32 %v241, %v269
    %v271 = vmul.f32 %v242, %v269
    %v272 = vmul.f32 %v243, %v269
    %v273 = vmul.f32 %v244, %v269
    %275 = vset.pattern.permute.xlu0 0
    %276 = vperm.xlu0 %275, %v223
    %v277 = vpop.permute.xlu0 %276
    %280 = vset.pattern.permute.xlu0 0
    %281 = vperm.xlu0 %280, %v224
    %v282 = vpop.permute.xlu0 %281
    %285 = vset.pattern.permute.xlu0 0
    %286 = vperm.xlu0 %285, %v225
    %v287 = vpop.permute.xlu0 %286
    %290 = vset.pattern.permute.xlu0 0
    %291 = vperm.xlu0 %290, %v226
    %v292 = vpop.permute.xlu0 %291
    %v294 = vmul.f32 %v270, %v277
    %v295 = vmul.f32 %v271, %v282
    %v296 = vmul.f32 %v272, %v287
    %v297 = vmul.f32 %v273, %v292
    %299 = vset.pattern.permute.xlu0 0
    %300 = vperm.xlu0 %299, %v227
    %v301 = vpop.permute.xlu0 %300
    %304 = vset.pattern.permute.xlu0 0
    %305 = vperm.xlu0 %304, %v228
    %v306 = vpop.permute.xlu0 %305
    %309 = vset.pattern.permute.xlu0 0
    %310 = vperm.xlu0 %309, %v229
    %v311 = vpop.permute.xlu0 %310
    %314 = vset.pattern.permute.xlu0 0
    %315 = vperm.xlu0 %314, %v230
    %v316 = vpop.permute.xlu0 %315
    %v318 = vadd.f32 %v294, %v301
    %v319 = vadd.f32 %v295, %v306
    %v320 = vadd.f32 %v296, %v311
    %v321 = vadd.f32 %v297, %v316
    %v322 = vld [vmem:[%s7] sm:$0xff]
    %v323 = vld [vmem:[%s7 + $0x8] sm:$0xff]
    %v324 = vld [vmem:[%s7 + $0x10] sm:$0xff]
    %v325 = vld [vmem:[%s7 + $0x18] sm:$0xff]
    %v326 = vld [vmem:[%s8] sm:$0xff]
    %v327 = vld [vmem:[%s8 + $0x8] sm:$0xff]
    %v328 = vld [vmem:[%s8 + $0x10] sm:$0xff]
    %v329 = vld [vmem:[%s8 + $0x18] sm:$0xff]
    %v330 = vld [vmem:[%s9] sm:$0xff]
    %v331 = vld [vmem:[%s9 + $0x8] sm:$0xff]
    %v332 = vld [vmem:[%s9 + $0x10] sm:$0xff]
    %v333 = vld [vmem:[%s9 + $0x18] sm:$0xff]
    %v334 = vld [vmem:[%s10] sm:$0xff]
    %v335 = vld [vmem:[%s10 + $0x8] sm:$0xff]
    %v336 = vld [vmem:[%s10 + $0x10] sm:$0xff]
    %v337 = vld [vmem:[%s10 + $0x18] sm:$0xff]
    %339 = vset.pattern.permute.xlu0 0
    %340 = vperm.xlu0 %339, %v326
    %v341 = vpop.permute.xlu0 %340
    %344 = vset.pattern.permute.xlu0 0
    %345 = vperm.xlu0 %344, %v327
    %v346 = vpop.permute.xlu0 %345
    %349 = vset.pattern.permute.xlu0 0
    %350 = vperm.xlu0 %349, %v328
    %v351 = vpop.permute.xlu0 %350
    %354 = vset.pattern.permute.xlu0 0
    %355 = vperm.xlu0 %354, %v329
    %v356 = vpop.permute.xlu0 %355
    %v359 = vsel %vm177, %v322, 0
    %v362 = vsel %vm177, %v323, 0
    %v365 = vsel %vm177, %v324, 0
    %v368 = vsel %vm177, %v325, 0
    %370 = vmatpush.msra.mxu0 0.0
    %371 = vmatpush.msra.mxu0 0.0
    %372 = vmatpush.msra.mxu0 0.0
    %373 = vmatpush.msra.mxu0 0.0
    %374 = vmatpush.msra.mxu0 0.0
    %375 = vmatpush.msra.mxu0 0.0
    %376 = vmatpush.msra.mxu0 0.0
    %377 = vmatpush.msra.mxu0 0.0
    %378 = vmatpush.msra.mxu0 0.0
    %379 = vmatpush.msra.mxu0 0.0
    %380 = vmatpush.msra.mxu0 0.0
    %381 = vmatpush.msra.mxu0 0.0
    %382 = vmatpush.msra.mxu0 %v321
    %383 = vmatpush.msra.mxu0 %v320
    %384 = vmatpush.msra.mxu0 %v319
    %385 = vmatpush.msra.mxu0 %v318
    %386 = vmatmul.f32.gmra.mxu0 %v359
    %v387 = vpop.f32.mrf.mxu0
    %v388 = vadd.f32 %v341, %v387
    %389 = vmatmul.f32.gmra.mxu0 %v362
    %v390 = vpop.f32.mrf.mxu0
    %v391 = vadd.f32 %v346, %v390
    %392 = vmatmul.f32.gmra.mxu0 %v365
    %v393 = vpop.f32.mrf.mxu0
    %v394 = vadd.f32 %v351, %v393
    %395 = vmatmul.f32.gmra.mxu0 %v368
    %v396 = vpop.f32.mrf.mxu0
    %v397 = vadd.f32 %v356, %v396
    %398 = vdwg.mxu0
    %v399 = vmax.f32 %v388, 0.0
    %v400 = vmax.f32 %v391, 0.0
    %v401 = vmax.f32 %v394, 0.0
    %v402 = vmax.f32 %v397, 0.0
    %v403 = vadd.f32 %v399, %v400
    %v404 = vadd.f32 %v403, %v401
    %v405 = vadd.f32 %v404, %v402
    %v406 = vrot.slane %v405, 4
    %v407 = vadd.f32 %v405, %v406
    %v408 = vrot.slane %v407, 2
    %v409 = vadd.f32 %v407, %v408
    %v410 = vrot.slane %v409, 1
    %v411 = vadd.f32 %v409, %v410
    %v412 = vmul.f32 %v411, %v66
    %v413 = vsub.f32 %v399, %v412
    %v414 = vsub.f32 %v400, %v412
    %v415 = vsub.f32 %v401, %v412
    %v416 = vsub.f32 %v402, %v412
    %v417 = vmul.f32 %v413, %v413
    %v418 = vmul.f32 %v414, %v414
    %v419 = vmul.f32 %v415, %v415
    %v420 = vmul.f32 %v416, %v416
    %v421 = vadd.f32 %v417, %v418
    %v422 = vadd.f32 %v421, %v419
    %v423 = vadd.f32 %v422, %v420
    %v424 = vrot.slane %v423, 4
    %v425 = vadd.f32 %v423, %v424
    %v426 = vrot.slane %v425, 2
    %v427 = vadd.f32 %v425, %v426
    %v428 = vrot.slane %v427, 1
    %v429 = vadd.f32 %v427, %v428
    %v430 = vmul.f32 %v429, %v66
    %v431 = vadd.f32 %v430, 1e-05
    %v432 = vrsqrt.pop %v431
    %v433 = vmul.f32 %v432, %v431
    %v434 = vmul.f32 %v433, %v432
    %v435 = vmul.f32 0.5, %v434
    %v436 = vsub.f32 1.5, %v435
    %v437 = vmul.f32 %v432, %v436
    %vm438 = vweird.f32 %v431
    %vm439 = vweird.f32 %v432
    %vm440 = vmor %vm438, %vm439
    %v441 = vsel %vm440, %v432, %v437
    %v442 = vmul.f32 %v413, %v441
    %v443 = vmul.f32 %v414, %v441
    %v444 = vmul.f32 %v415, %v441
    %v445 = vmul.f32 %v416, %v441
    %447 = vset.pattern.permute.xlu0 0
    %448 = vperm.xlu0 %447, %v330
    %v449 = vpop.permute.xlu0 %448
    %452 = vset.pattern.permute.xlu0 0
    %453 = vperm.xlu0 %452, %v331
    %v454 = vpop.permute.xlu0 %453
    %457 = vset.pattern.permute.xlu0 0
    %458 = vperm.xlu0 %457, %v332
    %v459 = vpop.permute.xlu0 %458
    %462 = vset.pattern.permute.xlu0 0
    %463 = vperm.xlu0 %462, %v333
    %v464 = vpop.permute.xlu0 %463
    %v466 = vmul.f32 %v442, %v449
    %v467 = vmul.f32 %v443, %v454
    %v468 = vmul.f32 %v444, %v459
    %v469 = vmul.f32 %v445, %v464
    %471 = vset.pattern.permute.xlu0 0
    %472 = vperm.xlu0 %471, %v334
    %v473 = vpop.permute.xlu0 %472
    %476 = vset.pattern.permute.xlu0 0
    %477 = vperm.xlu0 %476, %v335
    %v478 = vpop.permute.xlu0 %477
    %481 = vset.pattern.permute.xlu0 0
    %482 = vperm.xlu0 %481, %v336
    %v483 = vpop.permute.xlu0 %482
    %486 = vset.pattern.permute.xlu0 0
    %487 = vperm.xlu0 %486, %v337
    %v488 = vpop.permute.xlu0 %487
    %v490 = vadd.f32 %v466, %v473
    %v491 = vadd.f32 %v467, %v478
    %v492 = vadd.f32 %v468, %v483
    %v493 = vadd.f32 %v469, %v488
    %494 = vmatpush.msra.mxu0 0.0
    %495 = vmatpush.msra.mxu0 0.0
    %496 = vmatpush.msra.mxu0 0.0
    %497 = vmatpush.msra.mxu0 0.0
    %498 = vmatpush.msra.mxu0 0.0
    %499 = vmatpush.msra.mxu0 0.0
    %500 = vmatpush.msra.mxu0 0.0
    %501 = vmatpush.msra.mxu0 0.0
    %502 = vmatpush.msra.mxu0 0.0
    %503 = vmatpush.msra.mxu0 0.0
    %504 = vmatpush.msra.mxu0 0.0
    %505 = vmatpush.msra.mxu0 0.0
    %506 = vmatpush.msra.mxu0 %v493
    %507 = vmatpush.msra.mxu0 %v492
    %508 = vmatpush.msra.mxu0 %v491
    %509 = vmatpush.msra.mxu0 %v490
    %510 = vmatmul.f32.gmra.mxu0 %v359
    %v511 = vpop.f32.mrf.mxu0
    %v512 = vadd.f32 %v341, %v511
    %513 = vmatmul.f32.gmra.mxu0 %v362
    %v514 = vpop.f32.mrf.mxu0
    %v515 = vadd.f32 %v346, %v514
    %516 = vmatmul.f32.gmra.mxu0 %v365
    %v517 = vpop.f32.mrf.mxu0
    %v518 = vadd.f32 %v351, %v517
    %519 = vmatmul.f32.gmra.mxu0 %v368
    %v520 = vpop.f32.mrf.mxu0
    %v521 = vadd.f32 %v356, %v520
    %522 = vdwg.mxu0
    %v523 = vmax.f32 %v512, 0.0
    %v524 = vmax.f32 %v515, 0.0
    %v525 = vmax.f32 %v518, 0.0
    %v526 = vmax.f32 %v521, 0.0
    %v527 = vadd.f32 %v523, %v524
    %v528 = vadd.f32 %v527, %v525
    %v529 = vadd.f32 %v528, %v526
    %v530 = vrot.slane %v529, 4
    %v531 = vadd.f32 %v529, %v530
    %v532 = vrot.slane %v531, 2
    %v533 = vadd.f32 %v531, %v532
    %v534 = vrot.slane %v533, 1
    %v535 = vadd.f32 %v533, %v534
    %v536 = vmul.f32 %v535, %v66
    %v537 = vsub.f32 %v523, %v536
    %v538 = vsub.f32 %v524, %v536
    %v539 = vsub.f32 %v525, %v536
    %v540 = vsub.f32 %v526, %v536
    %v541 = vmul.f32 %v537, %v537
    %v542 = vmul.f32 %v538, %v538
    %v543 = vmul.f32 %v539, %v539
    %v544 = vmul.f32 %v540, %v540
    %v545 = vadd.f32 %v541, %v542
    %v546 = vadd.f32 %v545, %v543
    %v547 = vadd.f32 %v546, %v544
    %v548 = vrot.slane %v547, 4
    %v549 = vadd.f32 %v547, %v548
    %v550 = vrot.slane %v549, 2
    %v551 = vadd.f32 %v549, %v550
    %v552 = vrot.slane %v551, 1
    %v553 = vadd.f32 %v551, %v552
    %v554 = vmul.f32 %v553, %v66
    %v555 = vadd.f32 %v554, 1e-05
    %v556 = vrsqrt.pop %v555
    %v557 = vmul.f32 %v556, %v555
    %v558 = vmul.f32 %v557, %v556
    %v559 = vmul.f32 0.5, %v558
    %v560 = vsub.f32 1.5, %v559
    %v561 = vmul.f32 %v556, %v560
    %vm562 = vweird.f32 %v555
    %vm563 = vweird.f32 %v556
    %vm564 = vmor %vm562, %vm563
    %v565 = vsel %vm564, %v556, %v561
    %v566 = vmul.f32 %v537, %v565
    %v567 = vmul.f32 %v538, %v565
    %v568 = vmul.f32 %v539, %v565
    %v569 = vmul.f32 %v540, %v565
    %v570 = vmul.f32 %v566, %v449
    %v571 = vmul.f32 %v567, %v454
    %v572 = vmul.f32 %v568, %v459
    %v573 = vmul.f32 %v569, %v464
    %v574 = vadd.f32 %v570, %v473
    %v575 = vadd.f32 %v571, %v478
    %v576 = vadd.f32 %v572, %v483
    %v577 = vadd.f32 %v573, %v488
    %578 = vst [vmem:[#allocation2] sm:$0xff] %v574
    %579 = vst [vmem:[#allocation2 + $0x8] sm:$0xff] %v575
    %580 = vst [vmem:[#allocation2 + $0x10] sm:$0xff] %v576
    %581 = vst [vmem:[#allocation2 + $0x18] sm:$0xff] %v577
    // Predicated region
    $region46: #{tpu_custom_call.1} parent=1 // pred_check
      _
    $region47: #{tpu_custom_call.1} parent=1 // pred_check_branch
      %583 = sbr.rel (0) target = $region49
    $region48: #{tpu_custom_call.1} parent=1 // pred_region
      %585 = vsyncadd [#allocation3], 0
      %s586 = sshll.u32 [#allocation2], 4
      %s587 = int_to_ptr.vmem [resolvable:$true] %s586
      %s588 = sshll.u32 %s11, 4
      %s589 = int_to_ptr.hbm [resolvable:$true] %s588
      %594 = dma.vmem_to_hbm [thread:$0]  %s587, 512, %s589, [#allocation3], 128, 128, 8
    $region49: #{tpu_custom_call.1} parent=1 // pred_fallthru
      _
    // Predicated region
    $region50: #{tpu_custom_call.1} parent=1 // pred_check
      _
    $region51: #{tpu_custom_call.1} parent=1 // pred_check_branch
      %596 = sbr.rel (0) target = $region53
    $region52: #{tpu_custom_call.1} parent=1 // pred_region
      %598 = dma.done [#allocation3], 512
    $region53: #{tpu_custom_call.1} parent=1 // pred_fallthru
      _
    %599 = vsyncpa [#allocation3], 1

</llo_original>
